<compile_context>
chip_gen: v7x
topology: tpu7x:2x2x1
jax: 0.10.0
libtpu: 0.0.40
codegen_flags: <defaults>
</compile_context>

<pallas_src>
import jax
import jax.numpy as jnp
from jax.experimental import pallas as pl
from jax.experimental.pallas import tpu as pltpu

H1 = 128          # common hidden width
H2 = 256          # common output width
OUT_W = 128       # padded, lane-dense output width
VAL_COL = OUT_W - 1  # lane that carries the value head inside the output block


def dqn_kernel(x_ref, w1_ref, b1_ref, w2_ref, b2_ref,
               wva_ref, bva_ref, wa2_ref, ba2_ref, out_ref):
    x = x_ref[...]                                                     # (TB, S)

    # common_model: Linear(S,128) -> ReLU -> Linear(128,256)   (no ReLU at end)
    h1 = jnp.dot(x, w1_ref[...], preferred_element_type=jnp.float32) + b1_ref[...]
    h1 = jnp.maximum(h1, 0.0)                                          # (TB, 128)
    common = jnp.dot(h1, w2_ref[...],
                     preferred_element_type=jnp.float32) + b2_ref[...]  # (TB, 256)

    # Fused value + advantage-hidden matmul (single MXU pass):
    #   columns [0:128)  -> ReLU(common @ wa1 + ba1)   (advantage hidden)
    #   column  255      -> ReLU(common @ wv  + bv )   (value head)
    #   other columns    -> exactly 0 (zero weights & bias, ReLU(0) = 0)
    h = jnp.dot(common, wva_ref[...],
                preferred_element_type=jnp.float32) + bva_ref[...]      # (TB, 256)
    h = jnp.maximum(h, 0.0)
    a1 = h[:, :H1]                       # (TB, 128) advantage hidden
    vblk = h[:, H1:]                     # (TB, 128): value at lane 127, zeros elsewhere

    # advantage output, padded to 128 lanes (columns >= A are exactly 0)
    adv = jnp.dot(a1, wa2_ref[...],
                  preferred_element_type=jnp.float32) + ba2_ref[...]    # (TB, 128)

    # Pack value into lane 127 of the advantage block -> one lane-dense store.
    out_ref[...] = adv + vblk


def _round_up(n, m):
    return ((n + m - 1) // m) * m


def _prepare_padded_params(params, action_dim):
    """Build the fused / lane-padded weight tensors consumed by the kernel."""
    (w1, b1, w2, b2, wv, bv, wa1, ba1, wa2, ba2) = params
    # Fused (value | advantage-hidden) weight: (256, 256)
    wva = jnp.zeros((H2, 2 * H1), jnp.float32)
    wva = wva.at[:, :H1].set(wa1)
    wva = wva.at[:, H1 + VAL_COL].set(wv[:, 0])
    bva = jnp.zeros((1, 2 * H1), jnp.float32)
    bva = bva.at[:, :H1].set(ba1)
    bva = bva.at[0, H1 + VAL_COL].set(bv[0, 0])
    # Lane-dense padded final advantage layer: (128, 128) / (1, 128)
    wa2p = jnp.zeros((H1, OUT_W), jnp.float32).at[:, :action_dim].set(wa2)
    ba2p = jnp.zeros((1, OUT_W), jnp.float32).at[:, :action_dim].set(ba2)
    return w1, b1, w2, b2, wva, bva, wa2p, ba2p


def dqn_forward(x, params, *, tb=None):
    (w1, b1, w2, b2, wv, bv, wa1, ba1, wa2, ba2) = params
    B, S = x.shape
    A = wa2.shape[1]
    assert A <= VAL_COL, "action_dim must be <= 127 for the packed output layout"

    w1p, b1p, w2p, b2p, wva, bva, wa2p, ba2p = _prepare_padded_params(params, A)

    # Batch tile: multiple of 8 sublanes; large tiles fill MXU rows & pipeline DMA.
    if tb is None:
        tb = 256 if B >= 256 else _round_up(B, 8)
    tb = max(8, min(tb, _round_up(B, 8)))
    Bp = _round_up(B, tb)
    if Bp != B:
        x = jnp.pad(x, ((0, Bp - B), (0, 0)))
    grid = (Bp // tb,)

    def resident(shape):
        # Weights/biases: same block every grid step -> stay resident in VMEM.
        return pl.BlockSpec(shape, lambda i: (0, 0))

    out = pl.pallas_call(
        dqn_kernel,
        out_shape=jax.ShapeDtypeStruct((Bp, OUT_W), jnp.float32),
        grid_spec=pltpu.PrefetchScalarGridSpec(
            num_scalar_prefetch=0,
            grid=grid,
            in_specs=[
                pl.BlockSpec((tb, S), lambda i: (i, 0)),   # x tile
                resident((S, H1)), resident((1, H1)),      # common L1
                resident((H1, H2)), resident((1, H2)),     # common L2
                resident((H2, 2 * H1)), resident((1, 2 * H1)),  # fused value/adv-hidden
                resident((H1, OUT_W)), resident((1, OUT_W)),    # padded adv L2
            ],
            out_specs=pl.BlockSpec((tb, OUT_W), lambda i: (i, 0)),
        ),
        compiler_params=pltpu.CompilerParams(
            dimension_semantics=("parallel",)),  # shards batch tiles across TCs (v7x)
    )(x, w1p, b1p, w2p, b2p, wva, bva, wa2p, ba2p)

    adv = out[:B, :A]                 # (B, A)
    value = out[:B, VAL_COL:VAL_COL + 1]  # (B, 1)
    # Global mean over ALL advantage elements (matches torch.mean(advantage));
    # done here because it couples every batch tile of the grid.
    return value + adv - jnp.mean(adv)


def init_params(key, state_dim, action_dim):
    """Deterministic synthetic parameters (PyTorch-Linear init, transposed layout)."""
    def linear(key, fan_in, fan_out):
        kw, kb = jax.random.split(key)
        bound = 1.0 / jnp.sqrt(fan_in)
        w = jax.random.uniform(kw, (fan_in, fan_out), jnp.float32, -bound, bound)
        b = jax.random.uniform(kb, (1, fan_out), jnp.float32, -bound, bound)
        return w, b

    keys = jax.random.split(key, 5)
    w1, b1 = linear(keys[0], state_dim, H1)     # common Linear(state_dim,128)
    w2, b2 = linear(keys[1], H1, H2)            # common Linear(128,256)
    wv, bv = linear(keys[2], H2, 1)             # value Linear(256,1)
    wa1, ba1 = linear(keys[3], H2, H1)          # advantage Linear(256,128)
    wa2, ba2 = linear(keys[4], H1, action_dim)  # advantage Linear(128,action_dim)
    return (w1, b1, w2, b2, wv, bv, wa1, ba1, wa2, ba2)


def dqn_ref(x, params):
    """Pure-JAX reference with identical semantics (correctness check)."""
    (w1, b1, w2, b2, wv, bv, wa1, ba1, wa2, ba2) = params
    h1 = jnp.maximum(x @ w1 + b1, 0.0)
    common = h1 @ w2 + b2
    value = jnp.maximum(common @ wv + bv, 0.0)
    a1 = jnp.maximum(common @ wa1 + ba1, 0.0)
    adv = a1 @ wa2 + ba2
    return value + adv - jnp.mean(adv)


if __name__ == "__main__":
    # LunarLander-v2: state_dim=8, action_dim=4; small batch for the demo.
    batch, state_dim, action_dim = 8, 8, 4

    key = jax.random.PRNGKey(0)
    k_params, k_x = jax.random.split(key)
    params = init_params(k_params, state_dim, action_dim)
    x = jax.random.normal(k_x, (batch, state_dim), jnp.float32)

    out = dqn_forward(x, params)
    out = jax.block_until_ready(out)

    ref = dqn_ref(x, params)
    assert out.shape == (batch, action_dim)
    assert jnp.allclose(out, ref, atol=2e-5, rtol=2e-5), "mismatch vs JAX reference"

    print("KERNEL_OK")
</pallas_src>

<mosaic_0001>
module attributes {stable_mosaic.version = 11 : i64} {
  func.func @dqn_kernel(%arg0: i32, %arg1: memref<8x8xf32, #tpu.memory_space<vmem>>, %arg2: memref<8x128xf32, #tpu.memory_space<vmem>>, %arg3: memref<1x128xf32, #tpu.memory_space<vmem>>, %arg4: memref<128x256xf32, #tpu.memory_space<vmem>>, %arg5: memref<1x256xf32, #tpu.memory_space<vmem>>, %arg6: memref<256x256xf32, #tpu.memory_space<vmem>>, %arg7: memref<1x256xf32, #tpu.memory_space<vmem>>, %arg8: memref<128x128xf32, #tpu.memory_space<vmem>>, %arg9: memref<1x128xf32, #tpu.memory_space<vmem>>, %arg10: memref<8x128xf32, #tpu.memory_space<vmem>>) attributes {dimension_semantics = [#tpu.dimension_semantics<parallel>], iteration_bounds = array<i64: 1>, scalar_prefetch = 0 : i64, scratch_operands = 0 : i64, tpu.core_type = #tpu.core_type<tc>, window_params = [{transform_indices = @transform_0, window_bounds = array<i64: 8, 8>}, {pipeline_mode = #tpu.pipeline_mode<synchronous>, transform_indices = @transform_1, window_bounds = array<i64: 8, 128>}, {pipeline_mode = #tpu.pipeline_mode<synchronous>, transform_indices = @transform_2, window_bounds = array<i64: 1, 128>}, {pipeline_mode = #tpu.pipeline_mode<synchronous>, transform_indices = @transform_3, window_bounds = array<i64: 128, 256>}, {pipeline_mode = #tpu.pipeline_mode<synchronous>, transform_indices = @transform_4, window_bounds = array<i64: 1, 256>}, {pipeline_mode = #tpu.pipeline_mode<synchronous>, transform_indices = @transform_5, window_bounds = array<i64: 256, 256>}, {pipeline_mode = #tpu.pipeline_mode<synchronous>, transform_indices = @transform_6, window_bounds = array<i64: 1, 256>}, {pipeline_mode = #tpu.pipeline_mode<synchronous>, transform_indices = @transform_7, window_bounds = array<i64: 128, 128>}, {pipeline_mode = #tpu.pipeline_mode<synchronous>, transform_indices = @transform_8, window_bounds = array<i64: 1, 128>}, {transform_indices = @transform_9, window_bounds = array<i64: 8, 128>}]} {
    %c0 = arith.constant 0 : index
    %c0_0 = arith.constant 0 : index
    %0 = vector.load %arg1[%c0, %c0_0] : memref<8x8xf32, #tpu.memory_space<vmem>>, vector<8x8xf32>
    %c0_1 = arith.constant 0 : index
    %c0_2 = arith.constant 0 : index
    %1 = vector.load %arg2[%c0_1, %c0_2] : memref<8x128xf32, #tpu.memory_space<vmem>>, vector<8x128xf32>
    %cst = arith.constant dense<0.000000e+00> : vector<8x128xf32>
    %2 = tpu.matmul %0, %1, %cst {dimension_numbers = #tpu.dot_dimension_numbers<[1], [0], [0], [1], [0, 0, 1, 1], [], []>} : vector<8x8xf32>, vector<8x128xf32>, vector<8x128xf32> -> vector<8x128xf32>
    %c0_3 = arith.constant 0 : index
    %c0_4 = arith.constant 0 : index
    %3 = vector.load %arg3[%c0_3, %c0_4] : memref<1x128xf32, #tpu.memory_space<vmem>>, vector<1x128xf32>
    %4 = vector.broadcast %3 : vector<1x128xf32> to vector<8x128xf32>
    %5 = arith.addf %2, %4 : vector<8x128xf32>
    %cst_5 = arith.constant 0.000000e+00 : f32
    %6 = vector.broadcast %cst_5 : f32 to vector<8x128xf32>
    %7 = arith.maximumf %5, %6 : vector<8x128xf32>
    %c0_6 = arith.constant 0 : index
    %c0_7 = arith.constant 0 : index
    %8 = vector.load %arg4[%c0_6, %c0_7] : memref<128x256xf32, #tpu.memory_space<vmem>>, vector<128x256xf32>
    %cst_8 = arith.constant dense<0.000000e+00> : vector<8x256xf32>
    %9 = tpu.matmul %7, %8, %cst_8 {dimension_numbers = #tpu.dot_dimension_numbers<[1], [0], [0], [1], [0, 0, 1, 1], [], []>} : vector<8x128xf32>, vector<128x256xf32>, vector<8x256xf32> -> vector<8x256xf32>
    %c0_9 = arith.constant 0 : index
    %c0_10 = arith.constant 0 : index
    %10 = vector.load %arg5[%c0_9, %c0_10] : memref<1x256xf32, #tpu.memory_space<vmem>>, vector<1x256xf32>
    %11 = vector.broadcast %10 : vector<1x256xf32> to vector<8x256xf32>
    %12 = arith.addf %9, %11 : vector<8x256xf32>
    %c0_11 = arith.constant 0 : index
    %c0_12 = arith.constant 0 : index
    %13 = vector.load %arg6[%c0_11, %c0_12] : memref<256x256xf32, #tpu.memory_space<vmem>>, vector<256x256xf32>
    %cst_13 = arith.constant dense<0.000000e+00> : vector<8x256xf32>
    %14 = tpu.matmul %12, %13, %cst_13 {dimension_numbers = #tpu.dot_dimension_numbers<[1], [0], [0], [1], [0, 0, 1, 1], [], []>} : vector<8x256xf32>, vector<256x256xf32>, vector<8x256xf32> -> vector<8x256xf32>
    %c0_14 = arith.constant 0 : index
    %c0_15 = arith.constant 0 : index
    %15 = vector.load %arg7[%c0_14, %c0_15] : memref<1x256xf32, #tpu.memory_space<vmem>>, vector<1x256xf32>
    %16 = vector.broadcast %15 : vector<1x256xf32> to vector<8x256xf32>
    %17 = arith.addf %14, %16 : vector<8x256xf32>
    %cst_16 = arith.constant 0.000000e+00 : f32
    %18 = vector.broadcast %cst_16 : f32 to vector<8x256xf32>
    %19 = arith.maximumf %17, %18 : vector<8x256xf32>
    %20 = vector.extract_strided_slice %19 {offsets = [0, 0], sizes = [8, 128], strides = [1, 1]} : vector<8x256xf32> to vector<8x128xf32>
    %21 = vector.extract_strided_slice %19 {offsets = [0, 128], sizes = [8, 128], strides = [1, 1]} : vector<8x256xf32> to vector<8x128xf32>
    %c0_17 = arith.constant 0 : index
    %c0_18 = arith.constant 0 : index
    %22 = vector.load %arg8[%c0_17, %c0_18] : memref<128x128xf32, #tpu.memory_space<vmem>>, vector<128x128xf32>
    %cst_19 = arith.constant dense<0.000000e+00> : vector<8x128xf32>
    %23 = tpu.matmul %20, %22, %cst_19 {dimension_numbers = #tpu.dot_dimension_numbers<[1], [0], [0], [1], [0, 0, 1, 1], [], []>} : vector<8x128xf32>, vector<128x128xf32>, vector<8x128xf32> -> vector<8x128xf32>
    %c0_20 = arith.constant 0 : index
    %c0_21 = arith.constant 0 : index
    %24 = vector.load %arg9[%c0_20, %c0_21] : memref<1x128xf32, #tpu.memory_space<vmem>>, vector<1x128xf32>
    %25 = vector.broadcast %24 : vector<1x128xf32> to vector<8x128xf32>
    %26 = arith.addf %23, %25 : vector<8x128xf32>
    %27 = arith.addf %26, %21 : vector<8x128xf32>
    %c0_22 = arith.constant 0 : index
    %c0_23 = arith.constant 0 : index
    %28 = vector.load %arg10[%c0_22, %c0_23] : memref<8x128xf32, #tpu.memory_space<vmem>>, vector<8x128xf32>
    tpu.vector_store %arg10[%c0_22, %c0_23], %27 {strides = array<i32>} : memref<8x128xf32, #tpu.memory_space<vmem>>, vector<8x128xf32>,
    return
  }
  func.func @transform_0(%arg0: i32) -> (i32, i32) {
    %c0_i32 = arith.constant 0 : i32
    %c0_i32_0 = arith.constant 0 : i32
    return %arg0, %c0_i32 : i32, i32
  }
  func.func @transform_1(%arg0: i32) -> (i32, i32) {
    %c0_i32 = arith.constant 0 : i32
    %c0_i32_0 = arith.constant 0 : i32
    %c0_i32_1 = arith.constant 0 : i32
    return %c0_i32, %c0_i32_0 : i32, i32
  }
  func.func @transform_2(%arg0: i32) -> (i32, i32) {
    %c0_i32 = arith.constant 0 : i32
    %c0_i32_0 = arith.constant 0 : i32
    %c0_i32_1 = arith.constant 0 : i32
    return %c0_i32, %c0_i32_0 : i32, i32
  }
  func.func @transform_3(%arg0: i32) -> (i32, i32) {
    %c0_i32 = arith.constant 0 : i32
    %c0_i32_0 = arith.constant 0 : i32
    %c0_i32_1 = arith.constant 0 : i32
    return %c0_i32, %c0_i32_0 : i32, i32
  }
  func.func @transform_4(%arg0: i32) -> (i32, i32) {
    %c0_i32 = arith.constant 0 : i32
    %c0_i32_0 = arith.constant 0 : i32
    %c0_i32_1 = arith.constant 0 : i32
    return %c0_i32, %c0_i32_0 : i32, i32
  }
  func.func @transform_5(%arg0: i32) -> (i32, i32) {
    %c0_i32 = arith.constant 0 : i32
    %c0_i32_0 = arith.constant 0 : i32
    %c0_i32_1 = arith.constant 0 : i32
    return %c0_i32, %c0_i32_0 : i32, i32
  }
  func.func @transform_6(%arg0: i32) -> (i32, i32) {
    %c0_i32 = arith.constant 0 : i32
    %c0_i32_0 = arith.constant 0 : i32
    %c0_i32_1 = arith.constant 0 : i32
    return %c0_i32, %c0_i32_0 : i32, i32
  }
  func.func @transform_7(%arg0: i32) -> (i32, i32) {
    %c0_i32 = arith.constant 0 : i32
    %c0_i32_0 = arith.constant 0 : i32
    %c0_i32_1 = arith.constant 0 : i32
    return %c0_i32, %c0_i32_0 : i32, i32
  }
  func.func @transform_8(%arg0: i32) -> (i32, i32) {
    %c0_i32 = arith.constant 0 : i32
    %c0_i32_0 = arith.constant 0 : i32
    %c0_i32_1 = arith.constant 0 : i32
    return %c0_i32, %c0_i32_0 : i32, i32
  }
  func.func @transform_9(%arg0: i32) -> (i32, i32) {
    %c0_i32 = arith.constant 0 : i32
    %c0_i32_0 = arith.constant 0 : i32
    return %arg0, %c0_i32 : i32, i32
  }
}

</mosaic_0001>

<llo_original>
// kernel: tpu_custom_call.1
$region0: #{tpu_custom_call.1}
  #allocation0 [shape = 'u32[]', space=smem, size = 0x4, offset = 0x4, fixed_abs, tag = 'smem constant byte address 0x4 - core index']
  #allocation1 [shape = 'u32[144,128]{1,0:T(1,128)}', space=vmem, size = 0x12000, scoped, tag = 'internal scratch']
  %s0 = inlined_call_operand.hbm [shape: f32[8,8], index: 0, kind: input, shape index: {}]
  %s1 = inlined_call_operand.hbm [shape: f32[8,128], index: 1, kind: input, shape index: {}]
  %s2 = inlined_call_operand.vmem [shape: f32[1,128], index: 2, kind: input, shape index: {}]
  %s3 = inlined_call_operand.hbm [shape: f32[128,256], index: 3, kind: input, shape index: {}]
  %s4 = inlined_call_operand.vmem [shape: f32[1,256], index: 4, kind: input, shape index: {}]
  %s5 = inlined_call_operand.hbm [shape: f32[256,256], index: 5, kind: input, shape index: {}]
  %s6 = inlined_call_operand.vmem [shape: f32[1,256], index: 6, kind: input, shape index: {}]
  %s7 = inlined_call_operand.hbm [shape: f32[128,128], index: 7, kind: input, shape index: {}]
  %s8 = inlined_call_operand.vmem [shape: f32[1,128], index: 8, kind: input, shape index: {}]
  %s9 = inlined_call_operand.hbm [shape: f32[8,128], index: 9, kind: output, shape index: {}]
  %s10 = sld [smem:[#allocation0]]
  $region66: #{tpu_custom_call.1} parent=0
    _
  %s12 = ssub.s32 1, %s10
  %s13 = scalar_select 0, %s12, %s10
  $region1: #{tpu_custom_call.1} parent=0
    #allocation2 [shape = 'u8[4096]{0}', space=vmem, size = 0x1000, scoped, tag = 'input window, operand 0, single buffered']
    #allocation3 [shape = 's32[1]{0}', space=sflag, size = 0x4, scoped, tag = 'scoped memory for tpu_custom_call.1']
    #allocation4 [shape = 's32[1]{0}', space=sflag, size = 0x4, scoped, tag = 'scoped memory for tpu_custom_call.1']
    #allocation5 [shape = 'u8[4096]{0}', space=vmem, size = 0x1000, scoped, tag = 'input window, operand 1, single buffered']
    #allocation6 [shape = 's32[1]{0}', space=sflag, size = 0x4, scoped, tag = 'scoped memory for tpu_custom_call.1']
    #allocation7 [shape = 'u8[131072]{0}', space=vmem, size = 0x20000, scoped, tag = 'input window, operand 3, single buffered']
    #allocation8 [shape = 'u8[262144]{0}', space=vmem, size = 0x40000, scoped, tag = 'input window, operand 5, single buffered']
    #allocation9 [shape = 's32[1]{0}', space=sflag, size = 0x4, scoped, tag = 'scoped memory for tpu_custom_call.1']
    #allocation10 [shape = 'u8[65536]{0}', space=vmem, size = 0x10000, scoped, tag = 'input window, operand 7, single buffered']
    #allocation11 [shape = 'u8[4096]{0}', space=vmem, size = 0x1000, scoped, tag = 'output window, operand 0, single buffered']
    %14 = vsyncpa [#allocation3], 0
    %15 = vsyncpa [#allocation6], 0
    %16 = vsyncpa [#allocation9], 0
    %17 = vsyncpa [#allocation4], 0
    // Predicated region
    $region2: #{tpu_custom_call.1} parent=1 // pred_check
      _
    $region3: #{tpu_custom_call.1} parent=1 // pred_check_branch
      %19 = sbr.rel (0) target = $region5
    $region4: #{tpu_custom_call.1} parent=1 // pred_region
      %s21 = ssub.s32 128, 128
      %22 = vsyncadd [#allocation3], %s21
      %s24 = sshll.u32 [#allocation2], 4
      %s25 = int_to_ptr.vmem [resolvable:$true] %s24
      %27 = dma.hbm_to_vmem [thread:$0]  %s0, 128, %s25, [#allocation3]
    $region5: #{tpu_custom_call.1} parent=1 // pred_fallthru
      _
    // Predicated region
    $region6: #{tpu_custom_call.1} parent=1 // pred_check
      _
    $region7: #{tpu_custom_call.1} parent=1 // pred_check_branch
      %29 = sbr.rel (0) target = $region9
    $region8: #{tpu_custom_call.1} parent=1 // pred_region
      %s31 = ssub.s32 128, 128
      %32 = vsyncadd [#allocation6], %s31
      %s34 = sshll.u32 [#allocation5], 4
      %s35 = int_to_ptr.vmem [resolvable:$true] %s34
      %37 = dma.hbm_to_vmem [thread:$0]  %s1, 128, %s35, [#allocation6]
    $region9: #{tpu_custom_call.1} parent=1 // pred_fallthru
      _
    // Predicated region
    $region10: #{tpu_custom_call.1} parent=1 // pred_check
      _
    $region11: #{tpu_custom_call.1} parent=1 // pred_check_branch
      %39 = sbr.rel (0) target = $region13
    $region12: #{tpu_custom_call.1} parent=1 // pred_region
      _
    $region13: #{tpu_custom_call.1} parent=1 // pred_fallthru
      _
    // Predicated region
    $region14: #{tpu_custom_call.1} parent=1 // pred_check
      _
    $region15: #{tpu_custom_call.1} parent=1 // pred_check_branch
      %41 = sbr.rel (0) target = $region17
    $region16: #{tpu_custom_call.1} parent=1 // pred_region
      %s43 = ssub.s32 4096, 4096
      %44 = vsyncadd [#allocation6], %s43
      %s45 = sshll.u32 [#allocation7], 4
      %s46 = int_to_ptr.vmem [resolvable:$true] %s45
      %51 = dma.hbm_to_vmem [thread:$0]  %s3, 4096, %s46, [#allocation6], 256, 256, 16
    $region17: #{tpu_custom_call.1} parent=1 // pred_fallthru
      _
    // Predicated region
    $region18: #{tpu_custom_call.1} parent=1 // pred_check
      _
    $region19: #{tpu_custom_call.1} parent=1 // pred_check_branch
      %53 = sbr.rel (0) target = $region21
    $region20: #{tpu_custom_call.1} parent=1 // pred_region
      _
    $region21: #{tpu_custom_call.1} parent=1 // pred_fallthru
      _
    // Predicated region
    $region22: #{tpu_custom_call.1} parent=1 // pred_check
      _
    $region23: #{tpu_custom_call.1} parent=1 // pred_check_branch
      %55 = sbr.rel (0) target = $region25
    $region24: #{tpu_custom_call.1} parent=1 // pred_region
      %s57 = ssub.s32 8192, 8192
      %58 = vsyncadd [#allocation9], %s57
      %s59 = sshll.u32 [#allocation8], 4
      %s60 = int_to_ptr.vmem [resolvable:$true] %s59
      %65 = dma.hbm_to_vmem [thread:$0]  %s5, 8192, %s60, [#allocation9], 256, 256, 16
    $region25: #{tpu_custom_call.1} parent=1 // pred_fallthru
      _
    // Predicated region
    $region26: #{tpu_custom_call.1} parent=1 // pred_check
      _
    $region27: #{tpu_custom_call.1} parent=1 // pred_check_branch
      %67 = sbr.rel (0) target = $region29
    $region28: #{tpu_custom_call.1} parent=1 // pred_region
      _
    $region29: #{tpu_custom_call.1} parent=1 // pred_fallthru
      _
    // Predicated region
    $region30: #{tpu_custom_call.1} parent=1 // pred_check
      _
    $region31: #{tpu_custom_call.1} parent=1 // pred_check_branch
      %69 = sbr.rel (0) target = $region33
    $region32: #{tpu_custom_call.1} parent=1 // pred_region
      %s71 = ssub.s32 2048, 2048
      %72 = vsyncadd [#allocation9], %s71
      %s73 = sshll.u32 [#allocation10], 4
      %s74 = int_to_ptr.vmem [resolvable:$true] %s73
      %79 = dma.hbm_to_vmem [thread:$0]  %s7, 2048, %s74, [#allocation9], 128, 128, 8
    $region33: #{tpu_custom_call.1} parent=1 // pred_fallthru
      _
    // Predicated region
    $region34: #{tpu_custom_call.1} parent=1 // pred_check
      _
    $region35: #{tpu_custom_call.1} parent=1 // pred_check_branch
      %81 = sbr.rel (0) target = $region37
    $region36: #{tpu_custom_call.1} parent=1 // pred_region
      _
    $region37: #{tpu_custom_call.1} parent=1 // pred_fallthru
      _
    // Predicated region
    $region38: #{tpu_custom_call.1} parent=1 // pred_check
      _
    $region39: #{tpu_custom_call.1} parent=1 // pred_check_branch
      %83 = sbr.rel (0) target = $region41
    $region40: #{tpu_custom_call.1} parent=1 // pred_region
      %84 = dma.done [#allocation3], 128
    $region41: #{tpu_custom_call.1} parent=1 // pred_fallthru
      _
    // Predicated region
    $region42: #{tpu_custom_call.1} parent=1 // pred_check
      _
    $region43: #{tpu_custom_call.1} parent=1 // pred_check_branch
      %86 = sbr.rel (0) target = $region45
    $region44: #{tpu_custom_call.1} parent=1 // pred_region
      %87 = dma.done [#allocation6], 128
    $region45: #{tpu_custom_call.1} parent=1 // pred_fallthru
      _
    // Predicated region
    $region46: #{tpu_custom_call.1} parent=1 // pred_check
      _
    $region47: #{tpu_custom_call.1} parent=1 // pred_check_branch
      %89 = sbr.rel (0) target = $region49
    $region48: #{tpu_custom_call.1} parent=1 // pred_region
      %90 = dma.done [#allocation6], 4096
    $region49: #{tpu_custom_call.1} parent=1 // pred_fallthru
      _
    // Predicated region
    $region50: #{tpu_custom_call.1} parent=1 // pred_check
      _
    $region51: #{tpu_custom_call.1} parent=1 // pred_check_branch
      %92 = sbr.rel (0) target = $region53
    $region52: #{tpu_custom_call.1} parent=1 // pred_region
      %93 = dma.done [#allocation9], 8192
    $region53: #{tpu_custom_call.1} parent=1 // pred_fallthru
      _
    // Predicated region
    $region54: #{tpu_custom_call.1} parent=1 // pred_check
      _
    $region55: #{tpu_custom_call.1} parent=1 // pred_check_branch
      %95 = sbr.rel (0) target = $region57
    $region56: #{tpu_custom_call.1} parent=1 // pred_region
      %96 = dma.done [#allocation9], 2048
    $region57: #{tpu_custom_call.1} parent=1 // pred_fallthru
      _
    %v97 = vld [vmem:[#allocation2] sm:$0xff]
    %v98 = vld [vmem:[#allocation5] sm:$0xff]
    %v99 = vld [vmem:[%s2] sm:$0x1]
    %v101 = vlaneseq
    %v102 = vshrl.u32 %v101, 7
    %v103 = vsub.s32 0, %v102
    %v104 = vrot.slane %v99, %v103
    %vm106 = vcmask 64512
    %v108 = vsel %vm106, %v97, 0
    %110 = vmatprep.subr.mxu0 0.0
    %111 = vmatpush1.msra.mxu0 %v98
    %112 = vmatprep.subr.mxu0 0.0
    %113 = vmatpush1.msra.mxu0 0.0
    %114 = vmatprep.subr.mxu0 0.0
    %115 = vmatpush1.msra.mxu0 0.0
    %116 = vmatprep.subr.mxu0 0.0
    %117 = vmatpush1.msra.mxu0 0.0
    %118 = vmatprep.subr.mxu0 0.0
    %119 = vmatpush1.msra.mxu0 0.0
    %120 = vmatprep.subr.mxu0 0.0
    %121 = vmatpush1.msra.mxu0 0.0
    %122 = vmatprep.subr.mxu0 0.0
    %123 = vmatpush1.msra.mxu0 0.0
    %124 = vmatprep.subr.mxu0 0.0
    %125 = vmatpush1.msra.mxu0 0.0
    %126 = vmatprep.subr.mxu0 0.0
    %127 = vmatpush1.msra.mxu0 0.0
    %128 = vmatprep.subr.mxu0 0.0
    %129 = vmatpush1.msra.mxu0 0.0
    %130 = vmatprep.subr.mxu0 0.0
    %131 = vmatpush1.msra.mxu0 0.0
    %132 = vmatprep.subr.mxu0 0.0
    %133 = vmatpush1.msra.mxu0 0.0
    %134 = vmatprep.subr.mxu0 0.0
    %135 = vmatpush1.msra.mxu0 0.0
    %136 = vmatprep.subr.mxu0 0.0
    %137 = vmatpush1.msra.mxu0 0.0
    %138 = vmatprep.subr.mxu0 0.0
    %139 = vmatpush1.msra.mxu0 0.0
    %140 = vmatprep.subr.mxu0 0.0
    %141 = vmatpush1.msra.mxu0 0.0
    %142 = vmatprep.subr.mxu0 0.0
    %143 = vmatpush1.msra.mxu0 0.0
    %144 = vmatprep.subr.mxu0 0.0
    %145 = vmatpush1.msra.mxu0 0.0
    %146 = vmatprep.subr.mxu0 0.0
    %147 = vmatpush1.msra.mxu0 0.0
    %148 = vmatprep.subr.mxu0 0.0
    %149 = vmatpush1.msra.mxu0 0.0
    %150 = vmatprep.subr.mxu0 0.0
    %151 = vmatpush1.msra.mxu0 0.0
    %152 = vmatprep.subr.mxu0 0.0
    %153 = vmatpush1.msra.mxu0 0.0
    %154 = vmatprep.subr.mxu0 0.0
    %155 = vmatpush1.msra.mxu0 0.0
    %156 = vmatprep.subr.mxu0 0.0
    %157 = vmatpush1.msra.mxu0 0.0
    %158 = vmatprep.subr.mxu0 0.0
    %159 = vmatpush1.msra.mxu0 0.0
    %160 = vmatprep.subr.mxu0 0.0
    %161 = vmatpush1.msra.mxu0 0.0
    %162 = vmatprep.subr.mxu0 0.0
    %163 = vmatpush1.msra.mxu0 0.0
    %164 = vmatprep.subr.mxu0 0.0
    %165 = vmatpush1.msra.mxu0 0.0
    %166 = vmatprep.subr.mxu0 0.0
    %167 = vmatpush1.msra.mxu0 0.0
    %168 = vmatprep.subr.mxu0 0.0
    %169 = vmatpush1.msra.mxu0 0.0
    %170 = vmatprep.subr.mxu0 0.0
    %171 = vmatpush1.msra.mxu0 0.0
    %172 = vmatprep.subr.mxu0 0.0
    %173 = vmatpush1.msra.mxu0 0.0
    %174 = vmatprep.mubr.f32.mxu0 0.0
    %175 = vmatmul.mubr.f32.gmra.mrb[0].mxu0 %v108
    %v176 = vpop.f32.mrb[0].mxu0
    %v177 = vadd.f32 %v104, %v176
    %v178 = vpop.f32.mrb[0].mxu0
    %179 = vdwg.mxu0
    %v180 = vmax.f32 %v177, 0.0
    %v181 = vld [vmem:[#allocation7] sm:$0xff]
    %v182 = vld [vmem:[#allocation7 + $0x8] sm:$0xff]
    %v183 = vld [vmem:[#allocation7 + $0x10] sm:$0xff]
    %v184 = vld [vmem:[#allocation7 + $0x18] sm:$0xff]
    %v185 = vld [vmem:[#allocation7 + $0x20] sm:$0xff]
    %v186 = vld [vmem:[#allocation7 + $0x28] sm:$0xff]
    %v187 = vld [vmem:[#allocation7 + $0x30] sm:$0xff]
    %v188 = vld [vmem:[#allocation7 + $0x38] sm:$0xff]
    %v189 = vld [vmem:[#allocation7 + $0x40] sm:$0xff]
    %v190 = vld [vmem:[#allocation7 + $0x48] sm:$0xff]
    %v191 = vld [vmem:[#allocation7 + $0x50] sm:$0xff]
    %v192 = vld [vmem:[#allocation7 + $0x58] sm:$0xff]
    %v193 = vld [vmem:[#allocation7 + $0x60] sm:$0xff]
    %v194 = vld [vmem:[#allocation7 + $0x68] sm:$0xff]
    %v195 = vld [vmem:[#allocation7 + $0x70] sm:$0xff]
    %v196 = vld [vmem:[#allocation7 + $0x78] sm:$0xff]
    %v197 = vld [vmem:[#allocation7 + $0x80] sm:$0xff]
    %v198 = vld [vmem:[#allocation7 + $0x88] sm:$0xff]
    %v199 = vld [vmem:[#allocation7 + $0x90] sm:$0xff]
    %v200 = vld [vmem:[#allocation7 + $0x98] sm:$0xff]
    %v201 = vld [vmem:[#allocation7 + $0xa0] sm:$0xff]
    %v202 = vld [vmem:[#allocation7 + $0xa8] sm:$0xff]
    %v203 = vld [vmem:[#allocation7 + $0xb0] sm:$0xff]
    %v204 = vld [vmem:[#allocation7 + $0xb8] sm:$0xff]
    %v205 = vld [vmem:[#allocation7 + $0xc0] sm:$0xff]
    %v206 = vld [vmem:[#allocation7 + $0xc8] sm:$0xff]
    %v207 = vld [vmem:[#allocation7 + $0xd0] sm:$0xff]
    %v208 = vld [vmem:[#allocation7 + $0xd8] sm:$0xff]
    %v209 = vld [vmem:[#allocation7 + $0xe0] sm:$0xff]
    %v210 = vld [vmem:[#allocation7 + $0xe8] sm:$0xff]
    %v211 = vld [vmem:[#allocation7 + $0xf0] sm:$0xff]
    %v212 = vld [vmem:[#allocation7 + $0xf8] sm:$0xff]
    %v213 = vld [vmem:[%s4] sm:$0x3]
    %v215 = vlaneseq
    %v216 = vshrl.u32 %v215, 7
    %v217 = vsub.s32 0, %v216
    %v218 = vrot.slane %v213, %v217
    %v219 = vlaneseq
    %v220 = vshrl.u32 %v219, 7
    %v221 = vsub.s32 1, %v220
    %v222 = vrot.slane %v213, %v221
    %225 = vmatprep.subr.mxu0 %v182
    %226 = vmatpush1.msra.mxu0 %v181
    %227 = vmatprep.subr.mxu0 %v184
    %228 = vmatpush1.msra.mxu0 %v183
    %229 = vmatprep.subr.mxu0 %v186
    %230 = vmatpush1.msra.mxu0 %v185
    %231 = vmatprep.subr.mxu0 %v188
    %232 = vmatpush1.msra.mxu0 %v187
    %233 = vmatprep.subr.mxu0 %v190
    %234 = vmatpush1.msra.mxu0 %v189
    %235 = vmatprep.subr.mxu0 %v192
    %236 = vmatpush1.msra.mxu0 %v191
    %237 = vmatprep.subr.mxu0 %v194
    %238 = vmatpush1.msra.mxu0 %v193
    %239 = vmatprep.subr.mxu0 %v196
    %240 = vmatpush1.msra.mxu0 %v195
    %241 = vmatprep.subr.mxu0 %v198
    %242 = vmatpush1.msra.mxu0 %v197
    %243 = vmatprep.subr.mxu0 %v200
    %244 = vmatpush1.msra.mxu0 %v199
    %245 = vmatprep.subr.mxu0 %v202
    %246 = vmatpush1.msra.mxu0 %v201
    %247 = vmatprep.subr.mxu0 %v204
    %248 = vmatpush1.msra.mxu0 %v203
    %249 = vmatprep.subr.mxu0 %v206
    %250 = vmatpush1.msra.mxu0 %v205
    %251 = vmatprep.subr.mxu0 %v208
    %252 = vmatpush1.msra.mxu0 %v207
    %253 = vmatprep.subr.mxu0 %v210
    %254 = vmatpush1.msra.mxu0 %v209
    %255 = vmatprep.subr.mxu0 %v212
    %256 = vmatpush1.msra.mxu0 %v211
    %257 = vmatprep.subr.mxu0 0.0
    %258 = vmatpush1.msra.mxu0 0.0
    %259 = vmatprep.subr.mxu0 0.0
    %260 = vmatpush1.msra.mxu0 0.0
    %261 = vmatprep.subr.mxu0 0.0
    %262 = vmatpush1.msra.mxu0 0.0
    %263 = vmatprep.subr.mxu0 0.0
    %264 = vmatpush1.msra.mxu0 0.0
    %265 = vmatprep.subr.mxu0 0.0
    %266 = vmatpush1.msra.mxu0 0.0
    %267 = vmatprep.subr.mxu0 0.0
    %268 = vmatpush1.msra.mxu0 0.0
    %269 = vmatprep.subr.mxu0 0.0
    %270 = vmatpush1.msra.mxu0 0.0
    %271 = vmatprep.subr.mxu0 0.0
    %272 = vmatpush1.msra.mxu0 0.0
    %273 = vmatprep.subr.mxu0 0.0
    %274 = vmatpush1.msra.mxu0 0.0
    %275 = vmatprep.subr.mxu0 0.0
    %276 = vmatpush1.msra.mxu0 0.0
    %277 = vmatprep.subr.mxu0 0.0
    %278 = vmatpush1.msra.mxu0 0.0
    %279 = vmatprep.subr.mxu0 0.0
    %280 = vmatpush1.msra.mxu0 0.0
    %281 = vmatprep.subr.mxu0 0.0
    %282 = vmatpush1.msra.mxu0 0.0
    %283 = vmatprep.subr.mxu0 0.0
    %284 = vmatpush1.msra.mxu0 0.0
    %285 = vmatprep.subr.mxu0 0.0
    %286 = vmatpush1.msra.mxu0 0.0
    %287 = vmatprep.subr.mxu0 0.0
    %288 = vmatpush1.msra.mxu0 0.0
    %289 = vmatprep.mubr.f32.mxu0 0.0
    %290 = vmatmul.mubr.f32.gmra.mrb[0].mxu0 %v180
    %v291 = vpop.f32.mrb[0].mxu0
    %v292 = vadd.f32 %v218, %v291
    %v293 = vpop.f32.mrb[0].mxu0
    %v294 = vadd.f32 %v222, %v293
    %295 = vdwg.mxu0
    %v296 = vld [vmem:[#allocation8] sm:$0xff]
    %v297 = vld [vmem:[#allocation8 + $0x8] sm:$0xff]
    %v298 = vld [vmem:[#allocation8 + $0x10] sm:$0xff]
    %v299 = vld [vmem:[#allocation8 + $0x18] sm:$0xff]
    %v300 = vld [vmem:[#allocation8 + $0x20] sm:$0xff]
    %v301 = vld [vmem:[#allocation8 + $0x28] sm:$0xff]
    %v302 = vld [vmem:[#allocation8 + $0x30] sm:$0xff]
    %v303 = vld [vmem:[#allocation8 + $0x38] sm:$0xff]
    %v304 = vld [vmem:[#allocation8 + $0x40] sm:$0xff]
    %v305 = vld [vmem:[#allocation8 + $0x48] sm:$0xff]
    %v306 = vld [vmem:[#allocation8 + $0x50] sm:$0xff]
    %v307 = vld [vmem:[#allocation8 + $0x58] sm:$0xff]
    %v308 = vld [vmem:[#allocation8 + $0x60] sm:$0xff]
    %v309 = vld [vmem:[#allocation8 + $0x68] sm:$0xff]
    %v310 = vld [vmem:[#allocation8 + $0x70] sm:$0xff]
    %v311 = vld [vmem:[#allocation8 + $0x78] sm:$0xff]
    %v312 = vld [vmem:[#allocation8 + $0x80] sm:$0xff]
    %v313 = vld [vmem:[#allocation8 + $0x88] sm:$0xff]
    %v314 = vld [vmem:[#allocation8 + $0x90] sm:$0xff]
    %v315 = vld [vmem:[#allocation8 + $0x98] sm:$0xff]
    %v316 = vld [vmem:[#allocation8 + $0xa0] sm:$0xff]
    %v317 = vld [vmem:[#allocation8 + $0xa8] sm:$0xff]
    %v318 = vld [vmem:[#allocation8 + $0xb0] sm:$0xff]
    %v319 = vld [vmem:[#allocation8 + $0xb8] sm:$0xff]
    %v320 = vld [vmem:[#allocation8 + $0xc0] sm:$0xff]
    %v321 = vld [vmem:[#allocation8 + $0xc8] sm:$0xff]
    %v322 = vld [vmem:[#allocation8 + $0xd0] sm:$0xff]
    %v323 = vld [vmem:[#allocation8 + $0xd8] sm:$0xff]
    %v324 = vld [vmem:[#allocation8 + $0xe0] sm:$0xff]
    %v325 = vld [vmem:[#allocation8 + $0xe8] sm:$0xff]
    %v326 = vld [vmem:[#allocation8 + $0xf0] sm:$0xff]
    %v327 = vld [vmem:[#allocation8 + $0xf8] sm:$0xff]
    %v328 = vld [vmem:[#allocation8 + $0x100] sm:$0xff]
    %v329 = vld [vmem:[#allocation8 + $0x108] sm:$0xff]
    %v330 = vld [vmem:[#allocation8 + $0x110] sm:$0xff]
    %v331 = vld [vmem:[#allocation8 + $0x118] sm:$0xff]
    %v332 = vld [vmem:[#allocation8 + $0x120] sm:$0xff]
    %v333 = vld [vmem:[#allocation8 + $0x128] sm:$0xff]
    %v334 = vld [vmem:[#allocation8 + $0x130] sm:$0xff]
    %v335 = vld [vmem:[#allocation8 + $0x138] sm:$0xff]
    %v336 = vld [vmem:[#allocation8 + $0x140] sm:$0xff]
    %v337 = vld [vmem:[#allocation8 + $0x148] sm:$0xff]
    %v338 = vld [vmem:[#allocation8 + $0x150] sm:$0xff]
    %v339 = vld [vmem:[#allocation8 + $0x158] sm:$0xff]
    %v340 = vld [vmem:[#allocation8 + $0x160] sm:$0xff]
    %v341 = vld [vmem:[#allocation8 + $0x168] sm:$0xff]
    %v342 = vld [vmem:[#allocation8 + $0x170] sm:$0xff]
    %v343 = vld [vmem:[#allocation8 + $0x178] sm:$0xff]
    %v344 = vld [vmem:[#allocation8 + $0x180] sm:$0xff]
    %v345 = vld [vmem:[#allocation8 + $0x188] sm:$0xff]
    %v346 = vld [vmem:[#allocation8 + $0x190] sm:$0xff]
    %v347 = vld [vmem:[#allocation8 + $0x198] sm:$0xff]
    %v348 = vld [vmem:[#allocation8 + $0x1a0] sm:$0xff]
    %v349 = vld [vmem:[#allocation8 + $0x1a8] sm:$0xff]
    %v350 = vld [vmem:[#allocation8 + $0x1b0] sm:$0xff]
    %v351 = vld [vmem:[#allocation8 + $0x1b8] sm:$0xff]
    %v352 = vld [vmem:[#allocation8 + $0x1c0] sm:$0xff]
    %v353 = vld [vmem:[#allocation8 + $0x1c8] sm:$0xff]
    %v354 = vld [vmem:[#allocation8 + $0x1d0] sm:$0xff]
    %v355 = vld [vmem:[#allocation8 + $0x1d8] sm:$0xff]
    %v356 = vld [vmem:[#allocation8 + $0x1e0] sm:$0xff]
    %v357 = vld [vmem:[#allocation8 + $0x1e8] sm:$0xff]
    %v358 = vld [vmem:[#allocation8 + $0x1f0] sm:$0xff]
    %v359 = vld [vmem:[#allocation8 + $0x1f8] sm:$0xff]
    %v360 = vld [vmem:[%s6] sm:$0x3]
    %v362 = vlaneseq
    %v363 = vshrl.u32 %v362, 7
    %v364 = vsub.s32 0, %v363
    %v365 = vrot.slane %v360, %v364
    %v366 = vlaneseq
    %v367 = vshrl.u32 %v366, 7
    %v368 = vsub.s32 1, %v367
    %v369 = vrot.slane %v360, %v368
    %372 = vmatprep.subr.mxu0 %v297
    %373 = vmatpush1.msra.mxu0 %v296
    %374 = vmatprep.subr.mxu0 %v299
    %375 = vmatpush1.msra.mxu0 %v298
    %376 = vmatprep.subr.mxu0 %v301
    %377 = vmatpush1.msra.mxu0 %v300
    %378 = vmatprep.subr.mxu0 %v303
    %379 = vmatpush1.msra.mxu0 %v302
    %380 = vmatprep.subr.mxu0 %v305
    %381 = vmatpush1.msra.mxu0 %v304
    %382 = vmatprep.subr.mxu0 %v307
    %383 = vmatpush1.msra.mxu0 %v306
    %384 = vmatprep.subr.mxu0 %v309
    %385 = vmatpush1.msra.mxu0 %v308
    %386 = vmatprep.subr.mxu0 %v311
    %387 = vmatpush1.msra.mxu0 %v310
    %388 = vmatprep.subr.mxu0 %v313
    %389 = vmatpush1.msra.mxu0 %v312
    %390 = vmatprep.subr.mxu0 %v315
    %391 = vmatpush1.msra.mxu0 %v314
    %392 = vmatprep.subr.mxu0 %v317
    %393 = vmatpush1.msra.mxu0 %v316
    %394 = vmatprep.subr.mxu0 %v319
    %395 = vmatpush1.msra.mxu0 %v318
    %396 = vmatprep.subr.mxu0 %v321
    %397 = vmatpush1.msra.mxu0 %v320
    %398 = vmatprep.subr.mxu0 %v323
    %399 = vmatpush1.msra.mxu0 %v322
    %400 = vmatprep.subr.mxu0 %v325
    %401 = vmatpush1.msra.mxu0 %v324
    %402 = vmatprep.subr.mxu0 %v327
    %403 = vmatpush1.msra.mxu0 %v326
    %404 = vmatprep.subr.mxu0 %v329
    %405 = vmatpush1.msra.mxu0 %v328
    %406 = vmatprep.subr.mxu0 %v331
    %407 = vmatpush1.msra.mxu0 %v330
    %408 = vmatprep.subr.mxu0 %v333
    %409 = vmatpush1.msra.mxu0 %v332
    %410 = vmatprep.subr.mxu0 %v335
    %411 = vmatpush1.msra.mxu0 %v334
    %412 = vmatprep.subr.mxu0 %v337
    %413 = vmatpush1.msra.mxu0 %v336
    %414 = vmatprep.subr.mxu0 %v339
    %415 = vmatpush1.msra.mxu0 %v338
    %416 = vmatprep.subr.mxu0 %v341
    %417 = vmatpush1.msra.mxu0 %v340
    %418 = vmatprep.subr.mxu0 %v343
    %419 = vmatpush1.msra.mxu0 %v342
    %420 = vmatprep.subr.mxu0 %v345
    %421 = vmatpush1.msra.mxu0 %v344
    %422 = vmatprep.subr.mxu0 %v347
    %423 = vmatpush1.msra.mxu0 %v346
    %424 = vmatprep.subr.mxu0 %v349
    %425 = vmatpush1.msra.mxu0 %v348
    %426 = vmatprep.subr.mxu0 %v351
    %427 = vmatpush1.msra.mxu0 %v350
    %428 = vmatprep.subr.mxu0 %v353
    %429 = vmatpush1.msra.mxu0 %v352
    %430 = vmatprep.subr.mxu0 %v355
    %431 = vmatpush1.msra.mxu0 %v354
    %432 = vmatprep.subr.mxu0 %v357
    %433 = vmatpush1.msra.mxu0 %v356
    %434 = vmatprep.subr.mxu0 %v359
    %435 = vmatpush1.msra.mxu0 %v358
    %436 = vmatprep.mubr.f32.mxu0 %v294
    %437 = vmatmul.mubr.f32.gmra.mrb[0].mxu0 %v292
    %v438 = vpop.f32.mrb[0].mxu0
    %v439 = vadd.f32 %v365, %v438
    %v440 = vpop.f32.mrb[0].mxu0
    %v441 = vadd.f32 %v369, %v440
    %442 = vdwg.mxu0
    %v443 = vmax.f32 %v439, 0.0
    %v444 = vmax.f32 %v441, 0.0
    %v445 = vld [vmem:[#allocation10] sm:$0xff]
    %v446 = vld [vmem:[#allocation10 + $0x8] sm:$0xff]
    %v447 = vld [vmem:[#allocation10 + $0x10] sm:$0xff]
    %v448 = vld [vmem:[#allocation10 + $0x18] sm:$0xff]
    %v449 = vld [vmem:[#allocation10 + $0x20] sm:$0xff]
    %v450 = vld [vmem:[#allocation10 + $0x28] sm:$0xff]
    %v451 = vld [vmem:[#allocation10 + $0x30] sm:$0xff]
    %v452 = vld [vmem:[#allocation10 + $0x38] sm:$0xff]
    %v453 = vld [vmem:[#allocation10 + $0x40] sm:$0xff]
    %v454 = vld [vmem:[#allocation10 + $0x48] sm:$0xff]
    %v455 = vld [vmem:[#allocation10 + $0x50] sm:$0xff]
    %v456 = vld [vmem:[#allocation10 + $0x58] sm:$0xff]
    %v457 = vld [vmem:[#allocation10 + $0x60] sm:$0xff]
    %v458 = vld [vmem:[#allocation10 + $0x68] sm:$0xff]
    %v459 = vld [vmem:[#allocation10 + $0x70] sm:$0xff]
    %v460 = vld [vmem:[#allocation10 + $0x78] sm:$0xff]
    %v461 = vld [vmem:[%s8] sm:$0x1]
    %v463 = vlaneseq
    %v464 = vshrl.u32 %v463, 7
    %v465 = vsub.s32 0, %v464
    %v466 = vrot.slane %v461, %v465
    %468 = vmatprep.subr.mxu0 0.0
    %469 = vmatpush1.msra.mxu0 %v445
    %470 = vmatprep.subr.mxu0 0.0
    %471 = vmatpush1.msra.mxu0 %v446
    %472 = vmatprep.subr.mxu0 0.0
    %473 = vmatpush1.msra.mxu0 %v447
    %474 = vmatprep.subr.mxu0 0.0
    %475 = vmatpush1.msra.mxu0 %v448
    %476 = vmatprep.subr.mxu0 0.0
    %477 = vmatpush1.msra.mxu0 %v449
    %478 = vmatprep.subr.mxu0 0.0
    %479 = vmatpush1.msra.mxu0 %v450
    %480 = vmatprep.subr.mxu0 0.0
    %481 = vmatpush1.msra.mxu0 %v451
    %482 = vmatprep.subr.mxu0 0.0
    %483 = vmatpush1.msra.mxu0 %v452
    %484 = vmatprep.subr.mxu0 0.0
    %485 = vmatpush1.msra.mxu0 %v453
    %486 = vmatprep.subr.mxu0 0.0
    %487 = vmatpush1.msra.mxu0 %v454
    %488 = vmatprep.subr.mxu0 0.0
    %489 = vmatpush1.msra.mxu0 %v455
    %490 = vmatprep.subr.mxu0 0.0
    %491 = vmatpush1.msra.mxu0 %v456
    %492 = vmatprep.subr.mxu0 0.0
    %493 = vmatpush1.msra.mxu0 %v457
    %494 = vmatprep.subr.mxu0 0.0
    %495 = vmatpush1.msra.mxu0 %v458
    %496 = vmatprep.subr.mxu0 0.0
    %497 = vmatpush1.msra.mxu0 %v459
    %498 = vmatprep.subr.mxu0 0.0
    %499 = vmatpush1.msra.mxu0 %v460
    %500 = vmatprep.subr.mxu0 0.0
    %501 = vmatpush1.msra.mxu0 0.0
    %502 = vmatprep.subr.mxu0 0.0
    %503 = vmatpush1.msra.mxu0 0.0
    %504 = vmatprep.subr.mxu0 0.0
    %505 = vmatpush1.msra.mxu0 0.0
    %506 = vmatprep.subr.mxu0 0.0
    %507 = vmatpush1.msra.mxu0 0.0
    %508 = vmatprep.subr.mxu0 0.0
    %509 = vmatpush1.msra.mxu0 0.0
    %510 = vmatprep.subr.mxu0 0.0
    %511 = vmatpush1.msra.mxu0 0.0
    %512 = vmatprep.subr.mxu0 0.0
    %513 = vmatpush1.msra.mxu0 0.0
    %514 = vmatprep.subr.mxu0 0.0
    %515 = vmatpush1.msra.mxu0 0.0
    %516 = vmatprep.subr.mxu0 0.0
    %517 = vmatpush1.msra.mxu0 0.0
    %518 = vmatprep.subr.mxu0 0.0
    %519 = vmatpush1.msra.mxu0 0.0
    %520 = vmatprep.subr.mxu0 0.0
    %521 = vmatpush1.msra.mxu0 0.0
    %522 = vmatprep.subr.mxu0 0.0
    %523 = vmatpush1.msra.mxu0 0.0
    %524 = vmatprep.subr.mxu0 0.0
    %525 = vmatpush1.msra.mxu0 0.0
    %526 = vmatprep.subr.mxu0 0.0
    %527 = vmatpush1.msra.mxu0 0.0
    %528 = vmatprep.subr.mxu0 0.0
    %529 = vmatpush1.msra.mxu0 0.0
    %530 = vmatprep.subr.mxu0 0.0
    %531 = vmatpush1.msra.mxu0 0.0
    %532 = vmatprep.mubr.f32.mxu0 0.0
    %533 = vmatmul.mubr.f32.gmra.mrb[0].mxu0 %v443
    %v534 = vpop.f32.mrb[0].mxu0
    %v535 = vadd.f32 %v466, %v534
    %v536 = vpop.f32.mrb[0].mxu0
    %537 = vdwg.mxu0
    %v538 = vadd.f32 %v535, %v444
    %539 = vst [vmem:[#allocation11] sm:$0xff] %v538
    // Predicated region
    $region58: #{tpu_custom_call.1} parent=1 // pred_check
      _
    $region59: #{tpu_custom_call.1} parent=1 // pred_check_branch
      %541 = sbr.rel (0) target = $region61
    $region60: #{tpu_custom_call.1} parent=1 // pred_region
      %s543 = ssub.s32 128, 128
      %544 = vsyncadd [#allocation4], %s543
      %s546 = sshll.u32 [#allocation11], 4
      %s547 = int_to_ptr.vmem [resolvable:$true] %s546
      %549 = dma.vmem_to_hbm [thread:$0]  %s547, 128, %s9, [#allocation4]
    $region61: #{tpu_custom_call.1} parent=1 // pred_fallthru
      _
    // Predicated region
    $region62: #{tpu_custom_call.1} parent=1 // pred_check
      _
    $region63: #{tpu_custom_call.1} parent=1 // pred_check_branch
      %551 = sbr.rel (0) target = $region65
    $region64: #{tpu_custom_call.1} parent=1 // pred_region
      %552 = dma.done [#allocation4], 128
    $region65: #{tpu_custom_call.1} parent=1 // pred_fallthru
      _
    %553 = vsyncpa [#allocation3], 1
    %554 = vsyncpa [#allocation6], 1
    %555 = vsyncpa [#allocation9], 1
    %556 = vsyncpa [#allocation4], 1

</llo_original>
